<compile_context>
chip_gen: v7x
topology: tpu7x:2x2x1
jax: 0.10.0
libtpu: 0.0.40
codegen_flags: <defaults>
</compile_context>

<pallas_src>
import math
import functools

import jax
import jax.numpy as jnp
from jax import lax
from jax.experimental import pallas as pl
from jax.experimental.pallas import tpu as pltpu


def _round_up(v, m):
    return (v + m - 1) // m * m


def _pick_tile(t, cap):
    """Largest tile <= cap that is a multiple of 8 and divides t (else t itself)."""
    if t <= cap:
        return t
    cap8 = cap - cap % 8
    for c in range(cap8, 7, -8):
        if t % c == 0:
            return c
    return t


def _vmem_limit_bytes():
    """Explicit scoped-VMEM limit: ~100 MiB on v5e/v6e, ~52 MiB on v7x (64 MiB physical)."""
    try:
        cap = int(pltpu.get_tpu_info().vmem_capacity_bytes)
        return min(100 * 1024 * 1024, int(cap * 0.82))
    except Exception:
        return 48 * 1024 * 1024  # conservative fallback, safe on every current chip


def _const_spec(shape, index_map):
    """Grid-constant operand: single-buffered (its block index never changes)."""
    try:
        return pl.BlockSpec(shape, index_map, pipeline_mode=pl.Buffered(1))
    except (TypeError, AttributeError):
        return pl.BlockSpec(shape, index_map)


# --------------------------------------------------------------------------------------
# Kernel 1: K/V projection  x (1, tt, k) f32  @  W_kv (k, 2*kp) bf16  ->  (1, tt, 2*kp) bf16
# --------------------------------------------------------------------------------------
def _kv_proj_kernel(x_ref, wkv_ref, kv_ref):
    x = x_ref[0].astype(jnp.bfloat16)                      # cast to bf16 in VMEM
    kv_ref[0] = jnp.dot(x, wkv_ref[...],
                        preferred_element_type=jnp.float32).astype(jnp.bfloat16)


# --------------------------------------------------------------------------------------
# Kernel 2: fused Q projection + flash attention (online softmax over kv tiles)
#           + single wide unify matmul + bias.
# --------------------------------------------------------------------------------------
def _flash_unify_kernel(x_ref, kv_ref, wq_ref, wu_ref, bu_ref, o_ref,
                        q_scr, m_scr, l_scr, acc_scr, *, heads, hd_p):
    kp = heads * hd_p
    kvi = pl.program_id(2)
    nkv = pl.num_programs(2)

    @pl.when(kvi == 0)
    def _():
        # Q projection once per (batch, q-tile); 1/sqrt(k) already folded into Wq.
        xq = x_ref[0].astype(jnp.bfloat16)                                     # (tq, k)
        q_scr[...] = jnp.dot(xq, wq_ref[...],
                             preferred_element_type=jnp.float32).astype(jnp.bfloat16)
        m_scr[...] = jnp.full(m_scr.shape, -jnp.inf, jnp.float32)
        l_scr[...] = jnp.zeros(l_scr.shape, jnp.float32)
        acc_scr[...] = jnp.zeros(acc_scr.shape, jnp.float32)

    kv = kv_ref[0]                                                             # (tkv, 2*kp) bf16
    qv = q_scr[...]                                                            # (tq, kp)   bf16

    for h in range(heads):                        # static unroll -> 128-aligned static slices
        sl = slice(h * hd_p, (h + 1) * hd_p)
        qh = qv[:, sl]                                                         # (tq,  hd_p)
        kh = kv[:, sl]                                                         # (tkv, hd_p)
        vh = kv[:, kp + h * hd_p: kp + (h + 1) * hd_p]                         # (tkv, hd_p)

        # scores in "nt" form (contract last dims) -> no in-kernel transpose.
        s = lax.dot_general(qh, kh, (((1,), (1,)), ((), ())),
                            preferred_element_type=jnp.float32)                # (tq, tkv) f32

        m_prev = m_scr[h]                                                      # (tq, 1)
        m_new = jnp.maximum(m_prev, jnp.max(s, axis=-1, keepdims=True))
        alpha = jnp.exp(m_prev - m_new)                                        # (tq, 1) f32
        # exp in bf16 (EUP bf16 path on v6e/v7x); row-sum and rescale stay f32.
        p = jnp.exp((s - m_new).astype(jnp.bfloat16))                          # (tq, tkv) bf16
        l_scr[h] = alpha * l_scr[h] + jnp.sum(p.astype(jnp.float32),
                                              axis=-1, keepdims=True)
        m_scr[h] = m_new

        pv = jnp.dot(p, vh, preferred_element_type=jnp.float32)               # (tq, hd_p) f32
        acc_scr[:, sl] = alpha * acc_scr[:, sl] + pv

    @pl.when(kvi == nkv - 1)
    def _():
        # Normalize per head, then ONE wide unify matmul (contraction depth kp) + bias.
        for h in range(heads):
            sl = slice(h * hd_p, (h + 1) * hd_p)
            inv = pl.reciprocal(l_scr[h], approx=True)                         # (tq, 1) EUP
            acc_scr[:, sl] = acc_scr[:, sl] * inv
        sa = acc_scr[...].astype(jnp.bfloat16)                                 # (tq, kp)
        out = jnp.dot(sa, wu_ref[...], preferred_element_type=jnp.float32)     # (tq, k)
        o_ref[0] = (out + bu_ref[...]).astype(o_ref.dtype)                     # lane-dense store


# --------------------------------------------------------------------------------------
# Host-side, one-time parameter packing (hoisted out of the per-call path).
# --------------------------------------------------------------------------------------
def pack_params(wq, wk, wv, wu, bu, *, heads):
    """wq/wk/wv/wu: (k, k) nn.Linear layout (out, in);  bu: (k,)."""
    k = wq.shape[0]
    assert wq.shape == wk.shape == wv.shape == wu.shape == (k, k)
    assert k % heads == 0
    hd = k // heads
    hd_p = _round_up(hd, 128)            # 128-lane-aligned per-head slot
    kp = heads * hd_p
    scale = 1.0 / math.sqrt(k)           # module divides scores by sqrt(k) (full k)

    def pad_out_cols(w_t):               # (k, k) in-features-major; cols = head-major outputs
        if hd_p == hd:
            return w_t
        w3 = w_t.reshape(k, heads, hd)
        pad = jnp.zeros((k, heads, hd_p - hd), w_t.dtype)
        return jnp.concatenate([w3, pad], axis=2).reshape(k, kp)

    def pad_in_rows(w_t):                # (k, k); rows = head-major inputs
        if hd_p == hd:
            return w_t
        w3 = w_t.reshape(heads, hd, k)
        pad = jnp.zeros((heads, hd_p - hd, k), w_t.dtype)
        return jnp.concatenate([w3, pad], axis=1).reshape(kp, k)

    wq_p = pad_out_cols(wq.T * scale).astype(jnp.bfloat16)                  # (k, kp)
    wkv_p = jnp.concatenate([pad_out_cols(wk.T), pad_out_cols(wv.T)],
                            axis=1).astype(jnp.bfloat16)                    # (k, 2*kp)
    wu_p = pad_in_rows(wu.T).astype(jnp.bfloat16)                           # (kp, k)
    bu2 = bu.reshape(1, k).astype(jnp.float32)                              # (1, k)
    return dict(wq=wq_p, wkv=wkv_p, wu=wu_p, bu=bu2, heads=heads, hd_p=hd_p, k=k)


# --------------------------------------------------------------------------------------
# Forward pass.
# --------------------------------------------------------------------------------------
def self_attention(x, params, *, out_dtype=jnp.bfloat16,
                   tq_cap=512, tkv_cap=512, tt_cap=512):
    """x: (b, t, k) f32.  params: from pack_params().  Returns (b, t, k) in out_dtype."""
    b, t, k = x.shape
    heads, hd_p = params["heads"], params["hd_p"]
    assert params["k"] == k
    kp = heads * hd_p
    x = x.astype(jnp.float32)            # cast to bf16 happens inside the kernels (VMEM)

    vmem_limit = _vmem_limit_bytes()

    # ---- kernel 1: K/V projection (head-slot padded, bf16) -------------------------------
    tt = _pick_tile(t, tt_cap)
    kv = pl.pallas_call(
        _kv_proj_kernel,
        out_shape=jax.ShapeDtypeStruct((b, t, 2 * kp), jnp.bfloat16),
        grid_spec=pltpu.PrefetchScalarGridSpec(
            num_scalar_prefetch=0,
            grid=(b, t // tt),
            in_specs=[
                pl.BlockSpec((1, tt, k), lambda bi, ti: (bi, ti, 0)),
                _const_spec((k, 2 * kp), lambda bi, ti: (0, 0)),       # W_kv (grid-constant)
            ],
            out_specs=pl.BlockSpec((1, tt, 2 * kp), lambda bi, ti: (bi, ti, 0)),
        ),
        compiler_params=pltpu.CompilerParams(
            dimension_semantics=("parallel", "parallel"),
            vmem_limit_bytes=vmem_limit,
        ),
    )(x, params["wkv"])

    # ---- kernel 2: flash attention + fused Q projection + unify + bias -------------------
    # NOTE (v7x): for very large k shrink tq_cap/tkv_cap so that weights + tiles + scratch
    # stay under ~48 MiB (64 MiB physical VMEM per TensorCore).
    tq = _pick_tile(t, tq_cap)
    tkv = _pick_tile(t, tkv_cap)
    out = pl.pallas_call(
        functools.partial(_flash_unify_kernel, heads=heads, hd_p=hd_p),
        out_shape=jax.ShapeDtypeStruct((b, t, k), out_dtype),
        grid_spec=pltpu.PrefetchScalarGridSpec(
            num_scalar_prefetch=0,
            grid=(b, t // tq, t // tkv),
            in_specs=[
                pl.BlockSpec((1, tq, k), lambda bi, qi, ki: (bi, qi, 0)),        # x (queries)
                pl.BlockSpec((1, tkv, 2 * kp), lambda bi, qi, ki: (bi, ki, 0)),  # packed K/V
                _const_spec((k, kp), lambda bi, qi, ki: (0, 0)),                 # Wq^T (scaled)
                _const_spec((kp, k), lambda bi, qi, ki: (0, 0)),                 # Wu^T
                _const_spec((1, k), lambda bi, qi, ki: (0, 0)),                  # unify bias
            ],
            out_specs=pl.BlockSpec((1, tq, k), lambda bi, qi, ki: (bi, qi, 0)),
            scratch_shapes=[
                pltpu.VMEM((tq, kp), jnp.bfloat16),        # q tile (scaled, head-padded)
                pltpu.VMEM((heads, tq, 1), jnp.float32),   # running row-max per head
                pltpu.VMEM((heads, tq, 1), jnp.float32),   # running row-sum per head
                pltpu.VMEM((tq, kp), jnp.float32),         # unnormalized attention output
            ],
        ),
        compiler_params=pltpu.CompilerParams(
            dimension_semantics=("parallel", "parallel", "arbitrary"),
            vmem_limit_bytes=vmem_limit,
        ),
    )(x, kv, params["wq"], params["wu"], params["bu"])
    return out


# --------------------------------------------------------------------------------------
# Pure-JAX f32 reference replicating the PyTorch forward exactly.
# --------------------------------------------------------------------------------------
def self_attention_ref(x, wq, wk, wv, wu, bu, *, heads):
    b, t, k = x.shape
    hd = k // heads
    q = jnp.einsum("btk,ok->bto", x, wq)
    ke = jnp.einsum("btk,ok->bto", x, wk)
    v = jnp.einsum("btk,ok->bto", x, wv)

    def split(z):
        return z.reshape(b, t, heads, hd).transpose(0, 2, 1, 3).reshape(b * heads, t, hd)

    q, ke, v = split(q), split(ke), split(v)
    dotp = jnp.einsum("bqd,bkd->bqk", q, ke) / math.sqrt(k)
    dotp = jax.nn.softmax(dotp, axis=2)
    sa = jnp.einsum("bqk,bkd->bqd", dotp, v).reshape(b, heads, t, hd)
    out = sa.transpose(0, 2, 1, 3).reshape(b, t, k)
    return jnp.einsum("btk,ok->bto", out, wu) + bu


if __name__ == "__main__":
    # Small shapes consistent with the module defaults (k=256, heads=4); b=2, seq=16.
    B, T, K, HEADS = 2, 16, 256, 4

    key = jax.random.PRNGKey(0)
    kx, kq, kk_, kv_, ku, kb = jax.random.split(key, 6)
    x = jax.random.normal(kx, (B, T, K), dtype=jnp.float32)
    bound = 1.0 / math.sqrt(K)
    wq = jax.random.uniform(kq, (K, K), jnp.float32, -bound, bound)
    wk = jax.random.uniform(kk_, (K, K), jnp.float32, -bound, bound)
    wv = jax.random.uniform(kv_, (K, K), jnp.float32, -bound, bound)
    wu = jax.random.uniform(ku, (K, K), jnp.float32, -bound, bound)
    bu = jax.random.uniform(kb, (K,), jnp.float32, -bound, bound)

    params = pack_params(wq, wk, wv, wu, bu, heads=HEADS)   # one-time init, not per call
    out = self_attention(x, params)
    out = jax.block_until_ready(out)

    ref = self_attention_ref(x, wq, wk, wv, wu, bu, heads=HEADS)
    assert out.shape == (B, T, K)
    # bf16 matmul operands + bf16 exp + EUP approx reciprocal + bf16 output -> loose tol.
    err = float(jnp.max(jnp.abs(out.astype(jnp.float32) - ref)))
    assert jnp.allclose(out.astype(jnp.float32), ref, atol=3e-2, rtol=3e-2), f"mismatch {err}"

    print("KERNEL_OK")
</pallas_src>

<mosaic_0001>
module attributes {stable_mosaic.version = 11 : i64} {
  func.func @_kv_proj_kernel(%arg0: i32, %arg1: i32, %arg2: memref<1x16x256xf32, #tpu.memory_space<vmem>>, %arg3: memref<256x1024xbf16, #tpu.memory_space<vmem>>, %arg4: memref<1x16x1024xbf16, #tpu.memory_space<vmem>>) attributes {dimension_semantics = [#tpu.dimension_semantics<parallel>, #tpu.dimension_semantics<parallel>], iteration_bounds = array<i64: 2, 1>, scalar_prefetch = 0 : i64, scratch_operands = 0 : i64, tpu.core_type = #tpu.core_type<tc>, window_params = [{transform_indices = @transform_0, window_bounds = array<i64: 1, 16, 256>}, {pipeline_mode = #tpu.pipeline_mode<synchronous>, transform_indices = @transform_1, window_bounds = array<i64: 256, 1024>}, {transform_indices = @transform_2, window_bounds = array<i64: 1, 16, 1024>}]} {
    %c0 = arith.constant 0 : index
    %c0_0 = arith.constant 0 : index
    %c0_1 = arith.constant 0 : index
    %0 = vector.load %arg2[%c0, %c0_0, %c0_1] : memref<1x16x256xf32, #tpu.memory_space<vmem>>, vector<1x16x256xf32>
    %1 = vector.shape_cast %0 : vector<1x16x256xf32> to vector<16x256xf32>
    %2 = arith.truncf %1 : vector<16x256xf32> to vector<16x256xbf16>
    %c0_2 = arith.constant 0 : index
    %c0_3 = arith.constant 0 : index
    %3 = vector.load %arg3[%c0_2, %c0_3] : memref<256x1024xbf16, #tpu.memory_space<vmem>>, vector<256x1024xbf16>
    %cst = arith.constant dense<0.000000e+00> : vector<16x1024xf32>
    %4 = tpu.matmul %2, %3, %cst {dimension_numbers = #tpu.dot_dimension_numbers<[1], [0], [0], [1], [0, 0, 1, 1], [], []>} : vector<16x256xbf16>, vector<256x1024xbf16>, vector<16x1024xf32> -> vector<16x1024xf32>
    %5 = arith.truncf %4 : vector<16x1024xf32> to vector<16x1024xbf16>
    %c0_4 = arith.constant 0 : index
    %c0_5 = arith.constant 0 : index
    %c0_6 = arith.constant 0 : index
    %6 = vector.load %arg4[%c0_4, %c0_5, %c0_6] : memref<1x16x1024xbf16, #tpu.memory_space<vmem>>, vector<1x16x1024xbf16>
    %7 = vector.shape_cast %6 : vector<1x16x1024xbf16> to vector<16x1024xbf16>
    %8 = vector.shape_cast %5 : vector<16x1024xbf16> to vector<1x16x1024xbf16>
    tpu.vector_store %arg4[%c0_4, %c0_5, %c0_6], %8 {strides = array<i32>} : memref<1x16x1024xbf16, #tpu.memory_space<vmem>>, vector<1x16x1024xbf16>,
    return
  }
  func.func @transform_0(%arg0: i32, %arg1: i32) -> (i32, i32, i32) {
    %c0_i32 = arith.constant 0 : i32
    %c0_i32_0 = arith.constant 0 : i32
    return %arg0, %arg1, %c0_i32 : i32, i32, i32
  }
  func.func @transform_1(%arg0: i32, %arg1: i32) -> (i32, i32) {
    %c0_i32 = arith.constant 0 : i32
    %c0_i32_0 = arith.constant 0 : i32
    %c0_i32_1 = arith.constant 0 : i32
    return %c0_i32, %c0_i32_0 : i32, i32
  }
  func.func @transform_2(%arg0: i32, %arg1: i32) -> (i32, i32, i32) {
    %c0_i32 = arith.constant 0 : i32
    %c0_i32_0 = arith.constant 0 : i32
    return %arg0, %arg1, %c0_i32 : i32, i32, i32
  }
}

</mosaic_0001>

<llo_original>
// kernel: tpu_custom_call.1
$region0: #{tpu_custom_call.1}
  #allocation0 [shape = 'u32[]', space=smem, size = 0x4, offset = 0x4, fixed_abs, tag = 'smem constant byte address 0x4 - core index']
  #allocation1 [shape = 'u32[144,128]{1,0:T(1,128)}', space=vmem, size = 0x12000, scoped, tag = 'internal scratch']
  %s0 = inlined_call_operand.hbm [shape: f32[2,16,256], index: 0, kind: input, shape index: {}]
  %s1 = inlined_call_operand.hbm [shape: bf16[256,1024], index: 1, kind: input, shape index: {}]
  %s2 = inlined_call_operand.hbm [shape: bf16[2,16,1024], index: 2, kind: output, shape index: {}]
  %s3 = sld [smem:[#allocation0]]
  $region49: #{tpu_custom_call.1} parent=0
    _
  %s5 = ssub.s32 1, %s3
  %s6 = scalar_select 0, %s5, %s3
  $region1: #{tpu_custom_call.1} parent=0
    #allocation2 [shape = 'u8[32768]{0}', space=vmem, size = 0x8000, scoped, tag = 'input window, operand 0']
    #allocation3 [shape = 's32[2]{0}', space=sflag, size = 0x8, scoped, tag = 'scoped memory for tpu_custom_call.1']
    #allocation4 [shape = 's32[2]{0}', space=sflag, size = 0x8, scoped, tag = 'scoped memory for tpu_custom_call.1']
    #allocation5 [shape = 'u8[524288]{0}', space=vmem, size = 0x80000, scoped, tag = 'input window, operand 1, single buffered']
    #allocation6 [shape = 's32[1]{0}', space=sflag, size = 0x4, scoped, tag = 'scoped memory for tpu_custom_call.1']
    #allocation7 [shape = 'u8[65536]{0}', space=vmem, size = 0x10000, scoped, tag = 'output window, operand 0']
    %7 = vsyncpa [#allocation3], 0
    %s8 = scalar_lea.sflag [#allocation3], 1
    %9 = vsyncpa %s8, 0
    %10 = vsyncpa [#allocation6], 0
    %11 = vsyncpa [#allocation4], 0
    %s12 = scalar_lea.sflag [#allocation4], 1
    %13 = vsyncpa %s12, 0
    loop: start=0, step=1, limit=4
    $region2: #{tpu_custom_call.1} parent=1 // loop_pre_header
      _
    $region3: #{tpu_custom_call.1} parent=1 // loop_header
      %s15 = sphi 0, %s19
      %p16 = scmp.ge.s32.totalorder %s15, 4
      %s22 = sphi 0, %s34
      %s23 = sphi 0, %s30
      %s24 = sphi 0, %s22
      %s25 = sphi 0, %s23
      %s26 = sphi 0, %s24
      %s27 = sphi 0, %s25
      %s39 = sphi 0, %s41
      %s42 = sphi 0, %s39
      %s43 = sphi 0, %s42
      %s59 = sphi 0, %s43
      %s63 = sphi 0, %s63
      %s65 = sphi 0, %s63
      %s66 = sphi 0, %s65
      %s80 = sphi 0, %s66
      %s88 = sphi 0, %s90
      %s91 = sphi 0, %s88
      %s92 = sphi 0, %s91
      %s108 = sphi 0, %s92
    $region4: #{tpu_custom_call.1} parent=1 // loop_header_branch
      %18 = sbr.rel (%p16) target = $region8
    $region5: #{tpu_custom_call.1} parent=1 // loop_body
      %s20 = ssub.s32 %s15, 1
      %s21 = ssub.s32 %s15, 2
      %s28 = sadd.s32 1, %s23
      %p29 = scmp.ge.s32.totalorder %s28, 1
      %s30 = scalar_select %p29, 0, %s28
      %s31 = sadd.s32 1, %s22
      %s32 = scalar_select %p29, %s31, %s22
      %p33 = scmp.ge.s32.totalorder %s32, 2
      %s34 = scalar_select %p33, 0, %s32
      %s35 = ssub.s32 %s22, %s34
      %s36 = ssub.s32 %s23, %s30
      %s37 = sor.u32 %s35, %s36
      %p38 = scmp.eq.s32.totalorder %s37, 0
      %s40 = sadd.s32 %s39, 1
      %s41 = scalar_select %p38, %s39, %s40
      %p44 = pneg %p38
      %p45 = scmp.eq.s32.totalorder %s15, 1
      %p46 = por %p44, %p45
      %p47 = scmp.ne.s32.totalorder %s39, %s42
      %p48 = scmp.eq.s32.totalorder %s15, 0
      %p49 = por %p47, %p48
      %p50 = scmp.ne.s32.totalorder %s39, %s42
      %p51 = scmp.eq.s32.totalorder %s20, 1
      %p52 = por %p50, %p51
      %p53 = scmp.ne.s32.totalorder %s42, %s43
      %p54 = scmp.eq.s32.totalorder %s20, 0
      %p55 = por %p53, %p54
      %p56 = scmp.ne.s32.totalorder %s42, %s43
      %p57 = scmp.eq.s32.totalorder %s21, 1
      %p58 = por %p56, %p57
      %p60 = scmp.ne.s32.totalorder %s43, %s59
      %p61 = scmp.eq.s32.totalorder %s21, 0
      %p62 = por %p60, %p61
      %s64 = sadd.s32 %s63, 1
      %p67 = scmp.eq.s32.totalorder %s15, 1
      %p68 = scmp.ne.s32.totalorder %s63, %s65
      %p69 = scmp.eq.s32.totalorder %s15, 0
      %p70 = por %p68, %p69
      %p71 = scmp.ne.s32.totalorder %s63, %s65
      %p72 = scmp.eq.s32.totalorder %s20, 1
      %p73 = por %p71, %p72
      %p74 = scmp.ne.s32.totalorder %s65, %s66
      %p75 = scmp.eq.s32.totalorder %s20, 0
      %p76 = por %p74, %p75
      %p77 = scmp.ne.s32.totalorder %s65, %s66
      %p78 = scmp.eq.s32.totalorder %s21, 1
      %p79 = por %p77, %p78
      %p81 = scmp.ne.s32.totalorder %s66, %s80
      %p82 = scmp.eq.s32.totalorder %s21, 0
      %p83 = por %p81, %p82
      %s84 = ssub.s32 %s22, %s34
      %s85 = ssub.s32 %s23, %s30
      %s86 = sor.u32 %s84, %s85
      %p87 = scmp.eq.s32.totalorder %s86, 0
      %s89 = sadd.s32 %s88, 1
      %s90 = scalar_select %p87, %s88, %s89
      %p93 = pneg %p87
      %p94 = scmp.eq.s32.totalorder %s15, 1
      %p95 = por %p93, %p94
      %p96 = scmp.ne.s32.totalorder %s88, %s91
      %p97 = scmp.eq.s32.totalorder %s15, 0
      %p98 = por %p96, %p97
      %p99 = scmp.ne.s32.totalorder %s88, %s91
      %p100 = scmp.eq.s32.totalorder %s20, 1
      %p101 = por %p99, %p100
      %p102 = scmp.ne.s32.totalorder %s91, %s92
      %p103 = scmp.eq.s32.totalorder %s20, 0
      %p104 = por %p102, %p103
      %p105 = scmp.ne.s32.totalorder %s91, %s92
      %p106 = scmp.eq.s32.totalorder %s21, 1
      %p107 = por %p105, %p106
      %p109 = scmp.ne.s32.totalorder %s92, %s108
      %p110 = scmp.eq.s32.totalorder %s21, 0
      %p111 = por %p109, %p110
      %p112 = scmp.le.s32.totalorder 1, %s15
      %p113 = scmp.lt.s32.totalorder %s15, 3
      %p114 = pnand %p112, %p113
      %p115 = pneg %p114
      // Predicated region
      $region9: #{tpu_custom_call.1} parent=5 // pred_check
        _
      $region10: #{tpu_custom_call.1} parent=5 // pred_check_branch
        %117 = sbr.rel (%p114) target = $region12
      $region11: #{tpu_custom_call.1} parent=5 // pred_region
        %s118 = ssub.s32 %s15, 1
        // Predicated region
        $region13: #{tpu_custom_call.1} parent=11 // pred_check
          %p119 = pneg %p76
        $region14: #{tpu_custom_call.1} parent=11 // pred_check_branch
          %121 = sbr.rel (%p119) target = $region16
        $region15: #{tpu_custom_call.1} parent=11 // pred_region
          %s123 = ssub.s32 16384, 16384
          %124 = vsyncadd [#allocation6], %s123
          %s125 = sshll.u32 [#allocation5], 4
          %s126 = int_to_ptr.vmem [resolvable:$true] %s125
          %131 = dma.hbm_to_vmem [thread:$0]  %s1, 16384, %s126, [#allocation6], 512, 512, 32
        $region16: #{tpu_custom_call.1} parent=11 // pred_fallthru
          _
      $region12: #{tpu_custom_call.1} parent=5 // pred_fallthru
        _
      %p132 = scmp.lt.s32.totalorder %s15, 2
      // Predicated region
      $region17: #{tpu_custom_call.1} parent=5 // pred_check
        %p133 = pneg %p132
      $region18: #{tpu_custom_call.1} parent=5 // pred_check_branch
        %135 = sbr.rel (%p133) target = $region20
      $region19: #{tpu_custom_call.1} parent=5 // pred_region
        // Predicated region
        $region21: #{tpu_custom_call.1} parent=19 // pred_check
          %p136 = pneg %p49
        $region22: #{tpu_custom_call.1} parent=19 // pred_check_branch
          %138 = sbr.rel (%p136) target = $region24
        $region23: #{tpu_custom_call.1} parent=19 // pred_region
          %s139 = sand.u32 %s39, 1
          %s140 = scalar_lea.sflag [#allocation3], %s139
          %s141 = sand.u32 %s39, 1
          %s142 = smul.addr %s141, 32
          %s143 = scalar_lea.vmem [#allocation2], %s142
          %s144 = smul.u32 2, %s23
          %s146 = ssub.s32 512, 512
          %147 = vsyncadd %s140, %s146
          %s148 = smul.addr %s144, 2
          %s149 = smul.addr %s22, 4
          %s150 = sadd.s32 %s148, %s149
          %s151 = smul.addr %s150, 128
          %s152 = scalar_lea.hbm %s0, %s151
          %s153 = sshll.u32 %s143, 4
          %s154 = int_to_ptr.vmem [resolvable:$true] %s153
          %159 = dma.hbm_to_vmem [thread:$0]  %s152, 512, %s154, %s140, 256, 256, 16
        $region24: #{tpu_custom_call.1} parent=19 // pred_fallthru
          _
      $region20: #{tpu_custom_call.1} parent=5 // pred_fallthru
        _
      %p160 = scmp.le.s32.totalorder 1, %s15
      %p161 = scmp.lt.s32.totalorder %s15, 3
      %p162 = pnand %p160, %p161
      %p163 = pneg %p162
      // Predicated region
      $region25: #{tpu_custom_call.1} parent=5 // pred_check
        _
      $region26: #{tpu_custom_call.1} parent=5 // pred_check_branch
        %165 = sbr.rel (%p162) target = $region28
      $region27: #{tpu_custom_call.1} parent=5 // pred_region
        %s166 = ssub.s32 %s15, 1
        %s167 = sand.u32 %s42, 1
        %s168 = scalar_lea.sflag [#allocation3], %s167
        %s169 = sand.u32 %s42, 1
        %s170 = smul.addr %s169, 32
        %s171 = scalar_lea.vmem [#allocation2], %s170
        // Predicated region
        $region29: #{tpu_custom_call.1} parent=27 // pred_check
          %p172 = pneg %p55
        $region30: #{tpu_custom_call.1} parent=27 // pred_check_branch
          %174 = sbr.rel (%p172) target = $region32
        $region31: #{tpu_custom_call.1} parent=27 // pred_region
          %175 = dma.done %s168, 512
        $region32: #{tpu_custom_call.1} parent=27 // pred_fallthru
          _
        // Predicated region
        $region33: #{tpu_custom_call.1} parent=27 // pred_check
          %p176 = pneg %p76
        $region34: #{tpu_custom_call.1} parent=27 // pred_check_branch
          %178 = sbr.rel (%p176) target = $region36
        $region35: #{tpu_custom_call.1} parent=27 // pred_region
          %179 = dma.done [#allocation6], 16384
        $region36: #{tpu_custom_call.1} parent=27 // pred_fallthru
          _
        %s180 = sand.u32 %s42, 1
        %s181 = scalar_lea.sflag [#allocation3], %s180
        %s182 = sand.u32 %s42, 1
        %s183 = smul.addr %s182, 32
        %s184 = scalar_lea.vmem [#allocation2], %s183
        %p185 = pneg %p55
        %p186 = pneg %p52
        %p187 = pneg %p76
        %p188 = pneg %p73
        %p189 = pneg %p104
        %p190 = pneg %p101
        %s191 = sand.u32 %s91, 1
        %s192 = scalar_lea.sflag [#allocation4], %s191
        %s193 = sand.u32 %s91, 1
        %s194 = smul.addr %s193, 64
        %s195 = scalar_lea.vmem [#allocation7], %s194
        %s196 = smul.u32 2, %s25
        %s197 = smul.u32 2, %s25
        %v198 = vld [vmem:[%s171] sm:$0xff]
        %v199 = vld [vmem:[%s171 + $0x8] sm:$0xff]
        %v200 = vld [vmem:[%s171 + $0x10] sm:$0xff]
        %v201 = vld [vmem:[%s171 + $0x18] sm:$0xff]
        %v202 = vpack.c.bf16 %v200, %v198
        %v203 = vpack.c.bf16 %v201, %v199
        %v204 = vld [vmem:[#allocation5] sm:$0xff]
        %v205 = vld [vmem:[#allocation5 + $0x8] sm:$0xff]
        %v206 = vld [vmem:[#allocation5 + $0x10] sm:$0xff]
        %v207 = vld [vmem:[#allocation5 + $0x18] sm:$0xff]
        %v208 = vld [vmem:[#allocation5 + $0x20] sm:$0xff]
        %v209 = vld [vmem:[#allocation5 + $0x28] sm:$0xff]
        %v210 = vld [vmem:[#allocation5 + $0x30] sm:$0xff]
        %v211 = vld [vmem:[#allocation5 + $0x38] sm:$0xff]
        %v212 = vld [vmem:[#allocation5 + $0x40] sm:$0xff]
        %v213 = vld [vmem:[#allocation5 + $0x48] sm:$0xff]
        %v214 = vld [vmem:[#allocation5 + $0x50] sm:$0xff]
        %v215 = vld [vmem:[#allocation5 + $0x58] sm:$0xff]
        %v216 = vld [vmem:[#allocation5 + $0x60] sm:$0xff]
        %v217 = vld [vmem:[#allocation5 + $0x68] sm:$0xff]
        %v218 = vld [vmem:[#allocation5 + $0x70] sm:$0xff]
        %v219 = vld [vmem:[#allocation5 + $0x78] sm:$0xff]
        %v220 = vld [vmem:[#allocation5 + $0x80] sm:$0xff]
        %v221 = vld [vmem:[#allocation5 + $0x88] sm:$0xff]
        %v222 = vld [vmem:[#allocation5 + $0x90] sm:$0xff]
        %v223 = vld [vmem:[#allocation5 + $0x98] sm:$0xff]
        %v224 = vld [vmem:[#allocation5 + $0xa0] sm:$0xff]
        %v225 = vld [vmem:[#allocation5 + $0xa8] sm:$0xff]
        %v226 = vld [vmem:[#allocation5 + $0xb0] sm:$0xff]
        %v227 = vld [vmem:[#allocation5 + $0xb8] sm:$0xff]
        %v228 = vld [vmem:[#allocation5 + $0xc0] sm:$0xff]
        %v229 = vld [vmem:[#allocation5 + $0xc8] sm:$0xff]
        %v230 = vld [vmem:[#allocation5 + $0xd0] sm:$0xff]
        %v231 = vld [vmem:[#allocation5 + $0xd8] sm:$0xff]
        %v232 = vld [vmem:[#allocation5 + $0xe0] sm:$0xff]
        %v233 = vld [vmem:[#allocation5 + $0xe8] sm:$0xff]
        %v234 = vld [vmem:[#allocation5 + $0xf0] sm:$0xff]
        %v235 = vld [vmem:[#allocation5 + $0xf8] sm:$0xff]
        %v236 = vld [vmem:[#allocation5 + $0x100] sm:$0xff]
        %v237 = vld [vmem:[#allocation5 + $0x108] sm:$0xff]
        %v238 = vld [vmem:[#allocation5 + $0x110] sm:$0xff]
        %v239 = vld [vmem:[#allocation5 + $0x118] sm:$0xff]
        %v240 = vld [vmem:[#allocation5 + $0x120] sm:$0xff]
        %v241 = vld [vmem:[#allocation5 + $0x128] sm:$0xff]
        %v242 = vld [vmem:[#allocation5 + $0x130] sm:$0xff]
        %v243 = vld [vmem:[#allocation5 + $0x138] sm:$0xff]
        %v244 = vld [vmem:[#allocation5 + $0x140] sm:$0xff]
        %v245 = vld [vmem:[#allocation5 + $0x148] sm:$0xff]
        %v246 = vld [vmem:[#allocation5 + $0x150] sm:$0xff]
        %v247 = vld [vmem:[#allocation5 + $0x158] sm:$0xff]
        %v248 = vld [vmem:[#allocation5 + $0x160] sm:$0xff]
        %v249 = vld [vmem:[#allocation5 + $0x168] sm:$0xff]
        %v250 = vld [vmem:[#allocation5 + $0x170] sm:$0xff]
        %v251 = vld [vmem:[#allocation5 + $0x178] sm:$0xff]
        %v252 = vld [vmem:[#allocation5 + $0x180] sm:$0xff]
        %v253 = vld [vmem:[#allocation5 + $0x188] sm:$0xff]
        %v254 = vld [vmem:[#allocation5 + $0x190] sm:$0xff]
        %v255 = vld [vmem:[#allocation5 + $0x198] sm:$0xff]
        %v256 = vld [vmem:[#allocation5 + $0x1a0] sm:$0xff]
        %v257 = vld [vmem:[#allocation5 + $0x1a8] sm:$0xff]
        %v258 = vld [vmem:[#allocation5 + $0x1b0] sm:$0xff]
        %v259 = vld [vmem:[#allocation5 + $0x1b8] sm:$0xff]
        %v260 = vld [vmem:[#allocation5 + $0x1c0] sm:$0xff]
        %v261 = vld [vmem:[#allocation5 + $0x1c8] sm:$0xff]
        %v262 = vld [vmem:[#allocation5 + $0x1d0] sm:$0xff]
        %v263 = vld [vmem:[#allocation5 + $0x1d8] sm:$0xff]
        %v264 = vld [vmem:[#allocation5 + $0x1e0] sm:$0xff]
        %v265 = vld [vmem:[#allocation5 + $0x1e8] sm:$0xff]
        %v266 = vld [vmem:[#allocation5 + $0x1f0] sm:$0xff]
        %v267 = vld [vmem:[#allocation5 + $0x1f8] sm:$0xff]
        %v268 = vld [vmem:[#allocation5 + $0x200] sm:$0xff]
        %v269 = vld [vmem:[#allocation5 + $0x208] sm:$0xff]
        %v270 = vld [vmem:[#allocation5 + $0x210] sm:$0xff]
        %v271 = vld [vmem:[#allocation5 + $0x218] sm:$0xff]
        %v272 = vld [vmem:[#allocation5 + $0x220] sm:$0xff]
        %v273 = vld [vmem:[#allocation5 + $0x228] sm:$0xff]
        %v274 = vld [vmem:[#allocation5 + $0x230] sm:$0xff]
        %v275 = vld [vmem:[#allocation5 + $0x238] sm:$0xff]
        %v276 = vld [vmem:[#allocation5 + $0x240] sm:$0xff]
        %v277 = vld [vmem:[#allocation5 + $0x248] sm:$0xff]
        %v278 = vld [vmem:[#allocation5 + $0x250] sm:$0xff]
        %v279 = vld [vmem:[#allocation5 + $0x258] sm:$0xff]
        %v280 = vld [vmem:[#allocation5 + $0x260] sm:$0xff]
        %v281 = vld [vmem:[#allocation5 + $0x268] sm:$0xff]
        %v282 = vld [vmem:[#allocation5 + $0x270] sm:$0xff]
        %v283 = vld [vmem:[#allocation5 + $0x278] sm:$0xff]
        %v284 = vld [vmem:[#allocation5 + $0x280] sm:$0xff]
        %v285 = vld [vmem:[#allocation5 + $0x288] sm:$0xff]
        %v286 = vld [vmem:[#allocation5 + $0x290] sm:$0xff]
        %v287 = vld [vmem:[#allocation5 + $0x298] sm:$0xff]
        %v288 = vld [vmem:[#allocation5 + $0x2a0] sm:$0xff]
        %v289 = vld [vmem:[#allocation5 + $0x2a8] sm:$0xff]
        %v290 = vld [vmem:[#allocation5 + $0x2b0] sm:$0xff]
        %v291 = vld [vmem:[#allocation5 + $0x2b8] sm:$0xff]
        %v292 = vld [vmem:[#allocation5 + $0x2c0] sm:$0xff]
        %v293 = vld [vmem:[#allocation5 + $0x2c8] sm:$0xff]
        %v294 = vld [vmem:[#allocation5 + $0x2d0] sm:$0xff]
        %v295 = vld [vmem:[#allocation5 + $0x2d8] sm:$0xff]
        %v296 = vld [vmem:[#allocation5 + $0x2e0] sm:$0xff]
        %v297 = vld [vmem:[#allocation5 + $0x2e8] sm:$0xff]
        %v298 = vld [vmem:[#allocation5 + $0x2f0] sm:$0xff]
        %v299 = vld [vmem:[#allocation5 + $0x2f8] sm:$0xff]
        %v300 = vld [vmem:[#allocation5 + $0x300] sm:$0xff]
        %v301 = vld [vmem:[#allocation5 + $0x308] sm:$0xff]
        %v302 = vld [vmem:[#allocation5 + $0x310] sm:$0xff]
        %v303 = vld [vmem:[#allocation5 + $0x318] sm:$0xff]
        %v304 = vld [vmem:[#allocation5 + $0x320] sm:$0xff]
        %v305 = vld [vmem:[#allocation5 + $0x328] sm:$0xff]
        %v306 = vld [vmem:[#allocation5 + $0x330] sm:$0xff]
        %v307 = vld [vmem:[#allocation5 + $0x338] sm:$0xff]
        %v308 = vld [vmem:[#allocation5 + $0x340] sm:$0xff]
        %v309 = vld [vmem:[#allocation5 + $0x348] sm:$0xff]
        %v310 = vld [vmem:[#allocation5 + $0x350] sm:$0xff]
        %v311 = vld [vmem:[#allocation5 + $0x358] sm:$0xff]
        %v312 = vld [vmem:[#allocation5 + $0x360] sm:$0xff]
        %v313 = vld [vmem:[#allocation5 + $0x368] sm:$0xff]
        %v314 = vld [vmem:[#allocation5 + $0x370] sm:$0xff]
        %v315 = vld [vmem:[#allocation5 + $0x378] sm:$0xff]
        %v316 = vld [vmem:[#allocation5 + $0x380] sm:$0xff]
        %v317 = vld [vmem:[#allocation5 + $0x388] sm:$0xff]
        %v318 = vld [vmem:[#allocation5 + $0x390] sm:$0xff]
        %v319 = vld [vmem:[#allocation5 + $0x398] sm:$0xff]
        %v320 = vld [vmem:[#allocation5 + $0x3a0] sm:$0xff]
        %v321 = vld [vmem:[#allocation5 + $0x3a8] sm:$0xff]
        %v322 = vld [vmem:[#allocation5 + $0x3b0] sm:$0xff]
        %v323 = vld [vmem:[#allocation5 + $0x3b8] sm:$0xff]
        %v324 = vld [vmem:[#allocation5 + $0x3c0] sm:$0xff]
        %v325 = vld [vmem:[#allocation5 + $0x3c8] sm:$0xff]
        %v326 = vld [vmem:[#allocation5 + $0x3d0] sm:$0xff]
        %v327 = vld [vmem:[#allocation5 + $0x3d8] sm:$0xff]
        %v328 = vld [vmem:[#allocation5 + $0x3e0] sm:$0xff]
        %v329 = vld [vmem:[#allocation5 + $0x3e8] sm:$0xff]
        %v330 = vld [vmem:[#allocation5 + $0x3f0] sm:$0xff]
        %v331 = vld [vmem:[#allocation5 + $0x3f8] sm:$0xff]
        %v460 = vunpack.c.l.b16 %v204
        %v461 = vunpack.c.h.b16 %v204
        %v462 = vunpack.c.l.b16 %v205
        %v463 = vunpack.c.h.b16 %v205
        %v464 = vunpack.c.l.b16 %v206
        %v465 = vunpack.c.h.b16 %v206
        %v466 = vunpack.c.l.b16 %v207
        %v467 = vunpack.c.h.b16 %v207
        %v468 = vunpack.c.l.b16 %v208
        %v469 = vunpack.c.h.b16 %v208
        %v470 = vunpack.c.l.b16 %v209
        %v471 = vunpack.c.h.b16 %v209
        %v472 = vunpack.c.l.b16 %v210
        %v473 = vunpack.c.h.b16 %v210
        %v474 = vunpack.c.l.b16 %v211
        %v475 = vunpack.c.h.b16 %v211
        %v476 = vunpack.c.l.b16 %v212
        %v477 = vunpack.c.h.b16 %v212
        %v478 = vunpack.c.l.b16 %v213
        %v479 = vunpack.c.h.b16 %v213
        %v480 = vunpack.c.l.b16 %v214
        %v481 = vunpack.c.h.b16 %v214
        %v482 = vunpack.c.l.b16 %v215
        %v483 = vunpack.c.h.b16 %v215
        %v484 = vunpack.c.l.b16 %v216
        %v485 = vunpack.c.h.b16 %v216
        %v486 = vunpack.c.l.b16 %v217
        %v487 = vunpack.c.h.b16 %v217
        %v488 = vunpack.c.l.b16 %v218
        %v489 = vunpack.c.h.b16 %v218
        %v490 = vunpack.c.l.b16 %v219
        %v491 = vunpack.c.h.b16 %v219
        %v492 = vunpack.c.l.b16 %v220
        %v493 = vunpack.c.h.b16 %v220
        %v494 = vunpack.c.l.b16 %v221
        %v495 = vunpack.c.h.b16 %v221
        %v496 = vunpack.c.l.b16 %v222
        %v497 = vunpack.c.h.b16 %v222
        %v498 = vunpack.c.l.b16 %v223
        %v499 = vunpack.c.h.b16 %v223
        %v500 = vunpack.c.l.b16 %v224
        %v501 = vunpack.c.h.b16 %v224
        %v502 = vunpack.c.l.b16 %v225
        %v503 = vunpack.c.h.b16 %v225
        %v504 = vunpack.c.l.b16 %v226
        %v505 = vunpack.c.h.b16 %v226
        %v506 = vunpack.c.l.b16 %v227
        %v507 = vunpack.c.h.b16 %v227
        %v508 = vunpack.c.l.b16 %v228
        %v509 = vunpack.c.h.b16 %v228
        %v510 = vunpack.c.l.b16 %v229
        %v511 = vunpack.c.h.b16 %v229
        %v512 = vunpack.c.l.b16 %v230
        %v513 = vunpack.c.h.b16 %v230
        %v514 = vunpack.c.l.b16 %v231
        %v515 = vunpack.c.h.b16 %v231
        %v516 = vunpack.c.l.b16 %v232
        %v517 = vunpack.c.h.b16 %v232
        %v518 = vunpack.c.l.b16 %v233
        %v519 = vunpack.c.h.b16 %v233
        %v520 = vunpack.c.l.b16 %v234
        %v521 = vunpack.c.h.b16 %v234
        %v522 = vunpack.c.l.b16 %v235
        %v523 = vunpack.c.h.b16 %v235
        %v524 = vunpack.c.l.b16 %v236
        %v525 = vunpack.c.h.b16 %v236
        %v526 = vunpack.c.l.b16 %v237
        %v527 = vunpack.c.h.b16 %v237
        %v528 = vunpack.c.l.b16 %v238
        %v529 = vunpack.c.h.b16 %v238
        %v530 = vunpack.c.l.b16 %v239
        %v531 = vunpack.c.h.b16 %v239
        %v532 = vunpack.c.l.b16 %v240
        %v533 = vunpack.c.h.b16 %v240
        %v534 = vunpack.c.l.b16 %v241
        %v535 = vunpack.c.h.b16 %v241
        %v536 = vunpack.c.l.b16 %v242
        %v537 = vunpack.c.h.b16 %v242
        %v538 = vunpack.c.l.b16 %v243
        %v539 = vunpack.c.h.b16 %v243
        %v540 = vunpack.c.l.b16 %v244
        %v541 = vunpack.c.h.b16 %v244
        %v542 = vunpack.c.l.b16 %v245
        %v543 = vunpack.c.h.b16 %v245
        %v544 = vunpack.c.l.b16 %v246
        %v545 = vunpack.c.h.b16 %v246
        %v546 = vunpack.c.l.b16 %v247
        %v547 = vunpack.c.h.b16 %v247
        %v548 = vunpack.c.l.b16 %v248
        %v549 = vunpack.c.h.b16 %v248
        %v550 = vunpack.c.l.b16 %v249
        %v551 = vunpack.c.h.b16 %v249
        %v552 = vunpack.c.l.b16 %v250
        %v553 = vunpack.c.h.b16 %v250
        %v554 = vunpack.c.l.b16 %v251
        %v555 = vunpack.c.h.b16 %v251
        %v556 = vunpack.c.l.b16 %v252
        %v557 = vunpack.c.h.b16 %v252
        %v558 = vunpack.c.l.b16 %v253
        %v559 = vunpack.c.h.b16 %v253
        %v560 = vunpack.c.l.b16 %v254
        %v561 = vunpack.c.h.b16 %v254
        %v562 = vunpack.c.l.b16 %v255
        %v563 = vunpack.c.h.b16 %v255
        %v564 = vunpack.c.l.b16 %v256
        %v565 = vunpack.c.h.b16 %v256
        %v566 = vunpack.c.l.b16 %v257
        %v567 = vunpack.c.h.b16 %v257
        %v568 = vunpack.c.l.b16 %v258
        %v569 = vunpack.c.h.b16 %v258
        %v570 = vunpack.c.l.b16 %v259
        %v571 = vunpack.c.h.b16 %v259
        %v572 = vunpack.c.l.b16 %v260
        %v573 = vunpack.c.h.b16 %v260
        %v574 = vunpack.c.l.b16 %v261
        %v575 = vunpack.c.h.b16 %v261
        %v576 = vunpack.c.l.b16 %v262
        %v577 = vunpack.c.h.b16 %v262
        %v578 = vunpack.c.l.b16 %v263
        %v579 = vunpack.c.h.b16 %v263
        %v580 = vunpack.c.l.b16 %v264
        %v581 = vunpack.c.h.b16 %v264
        %v582 = vunpack.c.l.b16 %v265
        %v583 = vunpack.c.h.b16 %v265
        %v584 = vunpack.c.l.b16 %v266
        %v585 = vunpack.c.h.b16 %v266
        %v586 = vunpack.c.l.b16 %v267
        %v587 = vunpack.c.h.b16 %v267
        %v588 = vunpack.c.l.b16 %v268
        %v589 = vunpack.c.h.b16 %v268
        %v590 = vunpack.c.l.b16 %v269
        %v591 = vunpack.c.h.b16 %v269
        %v592 = vunpack.c.l.b16 %v270
        %v593 = vunpack.c.h.b16 %v270
        %v594 = vunpack.c.l.b16 %v271
        %v595 = vunpack.c.h.b16 %v271
        %v596 = vunpack.c.l.b16 %v272
        %v597 = vunpack.c.h.b16 %v272
        %v598 = vunpack.c.l.b16 %v273
        %v599 = vunpack.c.h.b16 %v273
        %v600 = vunpack.c.l.b16 %v274
        %v601 = vunpack.c.h.b16 %v274
        %v602 = vunpack.c.l.b16 %v275
        %v603 = vunpack.c.h.b16 %v275
        %v604 = vunpack.c.l.b16 %v276
        %v605 = vunpack.c.h.b16 %v276
        %v606 = vunpack.c.l.b16 %v277
        %v607 = vunpack.c.h.b16 %v277
        %v608 = vunpack.c.l.b16 %v278
        %v609 = vunpack.c.h.b16 %v278
        %v610 = vunpack.c.l.b16 %v279
        %v611 = vunpack.c.h.b16 %v279
        %v612 = vunpack.c.l.b16 %v280
        %v613 = vunpack.c.h.b16 %v280
        %v614 = vunpack.c.l.b16 %v281
        %v615 = vunpack.c.h.b16 %v281
        %v616 = vunpack.c.l.b16 %v282
        %v617 = vunpack.c.h.b16 %v282
        %v618 = vunpack.c.l.b16 %v283
        %v619 = vunpack.c.h.b16 %v283
        %v620 = vunpack.c.l.b16 %v284
        %v621 = vunpack.c.h.b16 %v284
        %v622 = vunpack.c.l.b16 %v285
        %v623 = vunpack.c.h.b16 %v285
        %v624 = vunpack.c.l.b16 %v286
        %v625 = vunpack.c.h.b16 %v286
        %v626 = vunpack.c.l.b16 %v287
        %v627 = vunpack.c.h.b16 %v287
        %v628 = vunpack.c.l.b16 %v288
        %v629 = vunpack.c.h.b16 %v288
        %v630 = vunpack.c.l.b16 %v289
        %v631 = vunpack.c.h.b16 %v289
        %v632 = vunpack.c.l.b16 %v290
        %v633 = vunpack.c.h.b16 %v290
        %v634 = vunpack.c.l.b16 %v291
        %v635 = vunpack.c.h.b16 %v291
        %v636 = vunpack.c.l.b16 %v292
        %v637 = vunpack.c.h.b16 %v292
        %v638 = vunpack.c.l.b16 %v293
        %v639 = vunpack.c.h.b16 %v293
        %v640 = vunpack.c.l.b16 %v294
        %v641 = vunpack.c.h.b16 %v294
        %v642 = vunpack.c.l.b16 %v295
        %v643 = vunpack.c.h.b16 %v295
        %v644 = vunpack.c.l.b16 %v296
        %v645 = vunpack.c.h.b16 %v296
        %v646 = vunpack.c.l.b16 %v297
        %v647 = vunpack.c.h.b16 %v297
        %v648 = vunpack.c.l.b16 %v298
        %v649 = vunpack.c.h.b16 %v298
        %v650 = vunpack.c.l.b16 %v299
        %v651 = vunpack.c.h.b16 %v299
        %v652 = vunpack.c.l.b16 %v300
        %v653 = vunpack.c.h.b16 %v300
        %v654 = vunpack.c.l.b16 %v301
        %v655 = vunpack.c.h.b16 %v301
        %v656 = vunpack.c.l.b16 %v302
        %v657 = vunpack.c.h.b16 %v302
        %v658 = vunpack.c.l.b16 %v303
        %v659 = vunpack.c.h.b16 %v303
        %v660 = vunpack.c.l.b16 %v304
        %v661 = vunpack.c.h.b16 %v304
        %v662 = vunpack.c.l.b16 %v305
        %v663 = vunpack.c.h.b16 %v305
        %v664 = vunpack.c.l.b16 %v306
        %v665 = vunpack.c.h.b16 %v306
        %v666 = vunpack.c.l.b16 %v307
        %v667 = vunpack.c.h.b16 %v307
        %v668 = vunpack.c.l.b16 %v308
        %v669 = vunpack.c.h.b16 %v308
        %v670 = vunpack.c.l.b16 %v309
        %v671 = vunpack.c.h.b16 %v309
        %v672 = vunpack.c.l.b16 %v310
        %v673 = vunpack.c.h.b16 %v310
        %v674 = vunpack.c.l.b16 %v311
        %v675 = vunpack.c.h.b16 %v311
        %v676 = vunpack.c.l.b16 %v312
        %v677 = vunpack.c.h.b16 %v312
        %v678 = vunpack.c.l.b16 %v313
        %v679 = vunpack.c.h.b16 %v313
        %v680 = vunpack.c.l.b16 %v314
        %v681 = vunpack.c.h.b16 %v314
        %v682 = vunpack.c.l.b16 %v315
        %v683 = vunpack.c.h.b16 %v315
        %v684 = vunpack.c.l.b16 %v316
        %v685 = vunpack.c.h.b16 %v316
        %v686 = vunpack.c.l.b16 %v317
        %v687 = vunpack.c.h.b16 %v317
        %v688 = vunpack.c.l.b16 %v318
        %v689 = vunpack.c.h.b16 %v318
        %v690 = vunpack.c.l.b16 %v319
        %v691 = vunpack.c.h.b16 %v319
        %v692 = vunpack.c.l.b16 %v320
        %v693 = vunpack.c.h.b16 %v320
        %v694 = vunpack.c.l.b16 %v321
        %v695 = vunpack.c.h.b16 %v321
        %v696 = vunpack.c.l.b16 %v322
        %v697 = vunpack.c.h.b16 %v322
        %v698 = vunpack.c.l.b16 %v323
        %v699 = vunpack.c.h.b16 %v323
        %v700 = vunpack.c.l.b16 %v324
        %v701 = vunpack.c.h.b16 %v324
        %v702 = vunpack.c.l.b16 %v325
        %v703 = vunpack.c.h.b16 %v325
        %v704 = vunpack.c.l.b16 %v326
        %v705 = vunpack.c.h.b16 %v326
        %v706 = vunpack.c.l.b16 %v327
        %v707 = vunpack.c.h.b16 %v327
        %v708 = vunpack.c.l.b16 %v328
        %v709 = vunpack.c.h.b16 %v328
        %v710 = vunpack.c.l.b16 %v329
        %v711 = vunpack.c.h.b16 %v329
        %v712 = vunpack.c.l.b16 %v330
        %v713 = vunpack.c.h.b16 %v330
        %v714 = vunpack.c.l.b16 %v331
        %v715 = vunpack.c.h.b16 %v331
        %v716 = vpack.c.b16 %v468, %v460
        %v717 = vpack.c.b16 %v469, %v461
        %v718 = vpack.c.b16 %v470, %v462
        %v719 = vpack.c.b16 %v471, %v463
        %v720 = vpack.c.b16 %v472, %v464
        %v721 = vpack.c.b16 %v473, %v465
        %v722 = vpack.c.b16 %v474, %v466
        %v723 = vpack.c.b16 %v475, %v467
        %v724 = vpack.c.b16 %v484, %v476
        %v725 = vpack.c.b16 %v485, %v477
        %v726 = vpack.c.b16 %v486, %v478
        %v727 = vpack.c.b16 %v487, %v479
        %v728 = vpack.c.b16 %v488, %v480
        %v729 = vpack.c.b16 %v489, %v481
        %v730 = vpack.c.b16 %v490, %v482
        %v731 = vpack.c.b16 %v491, %v483
        %v732 = vpack.c.b16 %v500, %v492
        %v733 = vpack.c.b16 %v501, %v493
        %v734 = vpack.c.b16 %v502, %v494
        %v735 = vpack.c.b16 %v503, %v495
        %v736 = vpack.c.b16 %v504, %v496
        %v737 = vpack.c.b16 %v505, %v497
        %v738 = vpack.c.b16 %v506, %v498
        %v739 = vpack.c.b16 %v507, %v499
        %v740 = vpack.c.b16 %v516, %v508
        %v741 = vpack.c.b16 %v517, %v509
        %v742 = vpack.c.b16 %v518, %v510
        %v743 = vpack.c.b16 %v519, %v511
        %v744 = vpack.c.b16 %v520, %v512
        %v745 = vpack.c.b16 %v521, %v513
        %v746 = vpack.c.b16 %v522, %v514
        %v747 = vpack.c.b16 %v523, %v515
        %v748 = vpack.c.b16 %v532, %v524
        %v749 = vpack.c.b16 %v533, %v525
        %v750 = vpack.c.b16 %v534, %v526
        %v751 = vpack.c.b16 %v535, %v527
        %v752 = vpack.c.b16 %v536, %v528
        %v753 = vpack.c.b16 %v537, %v529
        %v754 = vpack.c.b16 %v538, %v530
        %v755 = vpack.c.b16 %v539, %v531
        %v756 = vpack.c.b16 %v548, %v540
        %v757 = vpack.c.b16 %v549, %v541
        %v758 = vpack.c.b16 %v550, %v542
        %v759 = vpack.c.b16 %v551, %v543
        %v760 = vpack.c.b16 %v552, %v544
        %v761 = vpack.c.b16 %v553, %v545
        %v762 = vpack.c.b16 %v554, %v546
        %v763 = vpack.c.b16 %v555, %v547
        %v764 = vpack.c.b16 %v564, %v556
        %v765 = vpack.c.b16 %v565, %v557
        %v766 = vpack.c.b16 %v566, %v558
        %v767 = vpack.c.b16 %v567, %v559
        %v768 = vpack.c.b16 %v568, %v560
        %v769 = vpack.c.b16 %v569, %v561
        %v770 = vpack.c.b16 %v570, %v562
        %v771 = vpack.c.b16 %v571, %v563
        %v772 = vpack.c.b16 %v580, %v572
        %v773 = vpack.c.b16 %v581, %v573
        %v774 = vpack.c.b16 %v582, %v574
        %v775 = vpack.c.b16 %v583, %v575
        %v776 = vpack.c.b16 %v584, %v576
        %v777 = vpack.c.b16 %v585, %v577
        %v778 = vpack.c.b16 %v586, %v578
        %v779 = vpack.c.b16 %v587, %v579
        %v780 = vpack.c.b16 %v596, %v588
        %v781 = vpack.c.b16 %v597, %v589
        %v782 = vpack.c.b16 %v598, %v590
        %v783 = vpack.c.b16 %v599, %v591
        %v784 = vpack.c.b16 %v600, %v592
        %v785 = vpack.c.b16 %v601, %v593
        %v786 = vpack.c.b16 %v602, %v594
        %v787 = vpack.c.b16 %v603, %v595
        %v788 = vpack.c.b16 %v612, %v604
        %v789 = vpack.c.b16 %v613, %v605
        %v790 = vpack.c.b16 %v614, %v606
        %v791 = vpack.c.b16 %v615, %v607
        %v792 = vpack.c.b16 %v616, %v608
        %v793 = vpack.c.b16 %v617, %v609
        %v794 = vpack.c.b16 %v618, %v610
        %v795 = vpack.c.b16 %v619, %v611
        %v796 = vpack.c.b16 %v628, %v620
        %v797 = vpack.c.b16 %v629, %v621
        %v798 = vpack.c.b16 %v630, %v622
        %v799 = vpack.c.b16 %v631, %v623
        %v800 = vpack.c.b16 %v632, %v624
        %v801 = vpack.c.b16 %v633, %v625
        %v802 = vpack.c.b16 %v634, %v626
        %v803 = vpack.c.b16 %v635, %v627
        %v804 = vpack.c.b16 %v644, %v636
        %v805 = vpack.c.b16 %v645, %v637
        %v806 = vpack.c.b16 %v646, %v638
        %v807 = vpack.c.b16 %v647, %v639
        %v808 = vpack.c.b16 %v648, %v640
        %v809 = vpack.c.b16 %v649, %v641
        %v810 = vpack.c.b16 %v650, %v642
        %v811 = vpack.c.b16 %v651, %v643
        %v812 = vpack.c.b16 %v660, %v652
        %v813 = vpack.c.b16 %v661, %v653
        %v814 = vpack.c.b16 %v662, %v654
        %v815 = vpack.c.b16 %v663, %v655
        %v816 = vpack.c.b16 %v664, %v656
        %v817 = vpack.c.b16 %v665, %v657
        %v818 = vpack.c.b16 %v666, %v658
        %v819 = vpack.c.b16 %v667, %v659
        %v820 = vpack.c.b16 %v676, %v668
        %v821 = vpack.c.b16 %v677, %v669
        %v822 = vpack.c.b16 %v678, %v670
        %v823 = vpack.c.b16 %v679, %v671
        %v824 = vpack.c.b16 %v680, %v672
        %v825 = vpack.c.b16 %v681, %v673
        %v826 = vpack.c.b16 %v682, %v674
        %v827 = vpack.c.b16 %v683, %v675
        %v828 = vpack.c.b16 %v692, %v684
        %v829 = vpack.c.b16 %v693, %v685
        %v830 = vpack.c.b16 %v694, %v686
        %v831 = vpack.c.b16 %v695, %v687
        %v832 = vpack.c.b16 %v696, %v688
        %v833 = vpack.c.b16 %v697, %v689
        %v834 = vpack.c.b16 %v698, %v690
        %v835 = vpack.c.b16 %v699, %v691
        %v836 = vpack.c.b16 %v708, %v700
        %v837 = vpack.c.b16 %v709, %v701
        %v838 = vpack.c.b16 %v710, %v702
        %v839 = vpack.c.b16 %v711, %v703
        %v840 = vpack.c.b16 %v712, %v704
        %v841 = vpack.c.b16 %v713, %v705
        %v842 = vpack.c.b16 %v714, %v706
        %v843 = vpack.c.b16 %v715, %v707
        %972 = vmatprep.subr.bf16.mxu0 %v717
        %973 = vmatpush1.bf16.msra.mxu0 %v716
        %974 = vmatprep.subr.bf16.mxu0 %v725
        %975 = vmatpush1.bf16.msra.mxu0 %v724
        %976 = vmatprep.subr.bf16.mxu0 %v733
        %977 = vmatpush1.bf16.msra.mxu0 %v732
        %978 = vmatprep.subr.bf16.mxu0 %v741
        %979 = vmatpush1.bf16.msra.mxu0 %v740
        %980 = vmatprep.subr.bf16.mxu0 %v749
        %981 = vmatpush1.bf16.msra.mxu0 %v748
        %982 = vmatprep.subr.bf16.mxu0 %v757
        %983 = vmatpush1.bf16.msra.mxu0 %v756
        %984 = vmatprep.subr.bf16.mxu0 %v765
        %985 = vmatpush1.bf16.msra.mxu0 %v764
        %986 = vmatprep.subr.bf16.mxu0 %v773
        %987 = vmatpush1.bf16.msra.mxu0 %v772
        %988 = vmatprep.subr.bf16.mxu0 %v781
        %989 = vmatpush1.bf16.msra.mxu0 %v780
        %990 = vmatprep.subr.bf16.mxu0 %v789
        %991 = vmatpush1.bf16.msra.mxu0 %v788
        %992 = vmatprep.subr.bf16.mxu0 %v797
        %993 = vmatpush1.bf16.msra.mxu0 %v796
        %994 = vmatprep.subr.bf16.mxu0 %v805
        %995 = vmatpush1.bf16.msra.mxu0 %v804
        %996 = vmatprep.subr.bf16.mxu0 %v813
        %997 = vmatpush1.bf16.msra.mxu0 %v812
        %998 = vmatprep.subr.bf16.mxu0 %v821
        %999 = vmatpush1.bf16.msra.mxu0 %v820
        %1000 = vmatprep.subr.bf16.mxu0 %v829
        %1001 = vmatpush1.bf16.msra.mxu0 %v828
        %1002 = vmatprep.subr.bf16.mxu0 %v837
        %1003 = vmatpush1.bf16.msra.mxu0 %v836
        %1004 = vmatprep.mubr.bf16.mxu0 %v203
        %1005 = vmatmul.mubr.bf16.gmra.mrb[0].mxu0 %v202
        %v1006 = vpop.f32.mrb[0].mxu0
        %v1007 = vadd.f32 0.0, %v1006
        %v1008 = vpop.f32.mrb[0].mxu0
        %v1009 = vadd.f32 0.0, %v1008
        %v1010 = vpop.f32.mrb[0].mxu0
        %v1011 = vadd.f32 0.0, %v1010
        %v1012 = vpop.f32.mrb[0].mxu0
        %v1013 = vadd.f32 0.0, %v1012
        %1014 = vdwg.mxu0
        %1015 = vmatprep.subr.bf16.mxu0 %v719
        %1016 = vmatpush1.bf16.msra.mxu0 %v718
        %1017 = vmatprep.subr.bf16.mxu0 %v727
        %1018 = vmatpush1.bf16.msra.mxu0 %v726
        %1019 = vmatprep.subr.bf16.mxu0 %v735
        %1020 = vmatpush1.bf16.msra.mxu0 %v734
        %1021 = vmatprep.subr.bf16.mxu0 %v743
        %1022 = vmatpush1.bf16.msra.mxu0 %v742
        %1023 = vmatprep.subr.bf16.mxu0 %v751
        %1024 = vmatpush1.bf16.msra.mxu0 %v750
        %1025 = vmatprep.subr.bf16.mxu0 %v759
        %1026 = vmatpush1.bf16.msra.mxu0 %v758
        %1027 = vmatprep.subr.bf16.mxu0 %v767
        %1028 = vmatpush1.bf16.msra.mxu0 %v766
        %1029 = vmatprep.subr.bf16.mxu0 %v775
        %1030 = vmatpush1.bf16.msra.mxu0 %v774
        %1031 = vmatprep.subr.bf16.mxu0 %v783
        %1032 = vmatpush1.bf16.msra.mxu0 %v782
        %1033 = vmatprep.subr.bf16.mxu0 %v791
        %1034 = vmatpush1.bf16.msra.mxu0 %v790
        %1035 = vmatprep.subr.bf16.mxu0 %v799
        %1036 = vmatpush1.bf16.msra.mxu0 %v798
        %1037 = vmatprep.subr.bf16.mxu0 %v807
        %1038 = vmatpush1.bf16.msra.mxu0 %v806
        %1039 = vmatprep.subr.bf16.mxu0 %v815
        %1040 = vmatpush1.bf16.msra.mxu0 %v814
        %1041 = vmatprep.subr.bf16.mxu0 %v823
        %1042 = vmatpush1.bf16.msra.mxu0 %v822
        %1043 = vmatprep.subr.bf16.mxu0 %v831
        %1044 = vmatpush1.bf16.msra.mxu0 %v830
        %1045 = vmatprep.subr.bf16.mxu0 %v839
        %1046 = vmatpush1.bf16.msra.mxu0 %v838
        %1047 = vmatprep.mubr.bf16.mxu0 %v203
        %1048 = vmatmul.mubr.bf16.gmra.mrb[0].mxu0 %v202
        %v1049 = vpop.f32.mrb[0].mxu0
        %v1050 = vadd.f32 0.0, %v1049
        %v1051 = vpop.f32.mrb[0].mxu0
        %v1052 = vadd.f32 0.0, %v1051
        %v1053 = vpop.f32.mrb[0].mxu0
        %v1054 = vadd.f32 0.0, %v1053
        %v1055 = vpop.f32.mrb[0].mxu0
        %v1056 = vadd.f32 0.0, %v1055
        %1057 = vdwg.mxu0
        %1058 = vmatprep.subr.bf16.mxu0 %v721
        %1059 = vmatpush1.bf16.msra.mxu0 %v720
        %1060 = vmatprep.subr.bf16.mxu0 %v729
        %1061 = vmatpush1.bf16.msra.mxu0 %v728
        %1062 = vmatprep.subr.bf16.mxu0 %v737
        %1063 = vmatpush1.bf16.msra.mxu0 %v736
        %1064 = vmatprep.subr.bf16.mxu0 %v745
        %1065 = vmatpush1.bf16.msra.mxu0 %v744
        %1066 = vmatprep.subr.bf16.mxu0 %v753
        %1067 = vmatpush1.bf16.msra.mxu0 %v752
        %1068 = vmatprep.subr.bf16.mxu0 %v761
        %1069 = vmatpush1.bf16.msra.mxu0 %v760
        %1070 = vmatprep.subr.bf16.mxu0 %v769
        %1071 = vmatpush1.bf16.msra.mxu0 %v768
        %1072 = vmatprep.subr.bf16.mxu0 %v777
        %1073 = vmatpush1.bf16.msra.mxu0 %v776
        %1074 = vmatprep.subr.bf16.mxu0 %v785
        %1075 = vmatpush1.bf16.msra.mxu0 %v784
        %1076 = vmatprep.subr.bf16.mxu0 %v793
        %1077 = vmatpush1.bf16.msra.mxu0 %v792
        %1078 = vmatprep.subr.bf16.mxu0 %v801
        %1079 = vmatpush1.bf16.msra.mxu0 %v800
        %1080 = vmatprep.subr.bf16.mxu0 %v809
        %1081 = vmatpush1.bf16.msra.mxu0 %v808
        %1082 = vmatprep.subr.bf16.mxu0 %v817
        %1083 = vmatpush1.bf16.msra.mxu0 %v816
        %1084 = vmatprep.subr.bf16.mxu0 %v825
        %1085 = vmatpush1.bf16.msra.mxu0 %v824
        %1086 = vmatprep.subr.bf16.mxu0 %v833
        %1087 = vmatpush1.bf16.msra.mxu0 %v832
        %1088 = vmatprep.subr.bf16.mxu0 %v841
        %1089 = vmatpush1.bf16.msra.mxu0 %v840
        %1090 = vmatprep.mubr.bf16.mxu0 %v203
        %1091 = vmatmul.mubr.bf16.gmra.mrb[0].mxu0 %v202
        %v1092 = vpop.f32.mrb[0].mxu0
        %v1093 = vadd.f32 0.0, %v1092
        %v1094 = vpop.f32.mrb[0].mxu0
        %v1095 = vadd.f32 0.0, %v1094
        %v1096 = vpop.f32.mrb[0].mxu0
        %v1097 = vadd.f32 0.0, %v1096
        %v1098 = vpop.f32.mrb[0].mxu0
        %v1099 = vadd.f32 0.0, %v1098
        %1100 = vdwg.mxu0
        %1101 = vmatprep.subr.bf16.mxu0 %v723
        %1102 = vmatpush1.bf16.msra.mxu0 %v722
        %1103 = vmatprep.subr.bf16.mxu0 %v731
        %1104 = vmatpush1.bf16.msra.mxu0 %v730
        %1105 = vmatprep.subr.bf16.mxu0 %v739
        %1106 = vmatpush1.bf16.msra.mxu0 %v738
        %1107 = vmatprep.subr.bf16.mxu0 %v747
        %1108 = vmatpush1.bf16.msra.mxu0 %v746
        %1109 = vmatprep.subr.bf16.mxu0 %v755
        %1110 = vmatpush1.bf16.msra.mxu0 %v754
        %1111 = vmatprep.subr.bf16.mxu0 %v763
        %1112 = vmatpush1.bf16.msra.mxu0 %v762
        %1113 = vmatprep.subr.bf16.mxu0 %v771
        %1114 = vmatpush1.bf16.msra.mxu0 %v770
        %1115 = vmatprep.subr.bf16.mxu0 %v779
        %1116 = vmatpush1.bf16.msra.mxu0 %v778
        %1117 = vmatprep.subr.bf16.mxu0 %v787
        %1118 = vmatpush1.bf16.msra.mxu0 %v786
        %1119 = vmatprep.subr.bf16.mxu0 %v795
        %1120 = vmatpush1.bf16.msra.mxu0 %v794
        %1121 = vmatprep.subr.bf16.mxu0 %v803
        %1122 = vmatpush1.bf16.msra.mxu0 %v802
        %1123 = vmatprep.subr.bf16.mxu0 %v811
        %1124 = vmatpush1.bf16.msra.mxu0 %v810
        %1125 = vmatprep.subr.bf16.mxu0 %v819
        %1126 = vmatpush1.bf16.msra.mxu0 %v818
        %1127 = vmatprep.subr.bf16.mxu0 %v827
        %1128 = vmatpush1.bf16.msra.mxu0 %v826
        %1129 = vmatprep.subr.bf16.mxu0 %v835
        %1130 = vmatpush1.bf16.msra.mxu0 %v834
        %1131 = vmatprep.subr.bf16.mxu0 %v843
        %1132 = vmatpush1.bf16.msra.mxu0 %v842
        %1133 = vmatprep.mubr.bf16.mxu0 %v203
        %1134 = vmatmul.mubr.bf16.gmra.mrb[0].mxu0 %v202
        %v1135 = vpop.f32.mrb[0].mxu0
        %v1136 = vadd.f32 0.0, %v1135
        %v1137 = vpop.f32.mrb[0].mxu0
        %v1138 = vadd.f32 0.0, %v1137
        %v1139 = vpop.f32.mrb[0].mxu0
        %v1140 = vadd.f32 0.0, %v1139
        %v1141 = vpop.f32.mrb[0].mxu0
        %v1142 = vadd.f32 0.0, %v1141
        %1143 = vdwg.mxu0
        %v1144 = vpack.c.bf16 %v1011, %v1007
        %v1145 = vpack.c.bf16 %v1013, %v1009
        %v1146 = vpack.c.bf16 %v1054, %v1050
        %v1147 = vpack.c.bf16 %v1056, %v1052
        %v1148 = vpack.c.bf16 %v1097, %v1093
        %v1149 = vpack.c.bf16 %v1099, %v1095
        %v1150 = vpack.c.bf16 %v1140, %v1136
        %v1151 = vpack.c.bf16 %v1142, %v1138
        %v1160 = vunpack.c.l.b16 %v1144
        %v1161 = vunpack.c.l.b16 %v1145
        %v1162 = vunpack.c.l.b16 %v1146
        %v1163 = vunpack.c.l.b16 %v1147
        %v1164 = vunpack.c.l.b16 %v1148
        %v1165 = vunpack.c.l.b16 %v1149
        %v1166 = vunpack.c.l.b16 %v1150
        %v1167 = vunpack.c.l.b16 %v1151
        %v1168 = vunpack.c.h.b16 %v1144
        %v1169 = vunpack.c.h.b16 %v1145
        %v1170 = vunpack.c.h.b16 %v1146
        %v1171 = vunpack.c.h.b16 %v1147
        %v1172 = vunpack.c.h.b16 %v1148
        %v1173 = vunpack.c.h.b16 %v1149
        %v1174 = vunpack.c.h.b16 %v1150
        %v1175 = vunpack.c.h.b16 %v1151
        %v1176 = vpack.c.b16 %v1161, %v1160
        %v1177 = vpack.c.b16 %v1163, %v1162
        %v1178 = vpack.c.b16 %v1165, %v1164
        %v1179 = vpack.c.b16 %v1167, %v1166
        %v1180 = vpack.c.b16 %v1169, %v1168
        %v1181 = vpack.c.b16 %v1171, %v1170
        %v1182 = vpack.c.b16 %v1173, %v1172
        %v1183 = vpack.c.b16 %v1175, %v1174
        %1192 = vst [vmem:[%s195] sm:$0xff] %v1176
        %1193 = vst [vmem:[%s195 + $0x8] sm:$0xff] %v1177
        %1194 = vst [vmem:[%s195 + $0x10] sm:$0xff] %v1178
        %1195 = vst [vmem:[%s195 + $0x18] sm:$0xff] %v1179
        %1196 = vst [vmem:[%s195 + $0x20] sm:$0xff] %v1180
        %1197 = vst [vmem:[%s195 + $0x28] sm:$0xff] %v1181
        %1198 = vst [vmem:[%s195 + $0x30] sm:$0xff] %v1182
        %1199 = vst [vmem:[%s195 + $0x38] sm:$0xff] %v1183
        %s1200 = sand.u32 %s91, 1
        %s1201 = scalar_lea.sflag [#allocation4], %s1200
        %s1202 = sand.u32 %s91, 1
        %s1203 = smul.addr %s1202, 64
        %s1204 = scalar_lea.vmem [#allocation7], %s1203
        // Predicated region
        $region37: #{tpu_custom_call.1} parent=27 // pred_check
          %p1205 = pneg %p101
        $region38: #{tpu_custom_call.1} parent=27 // pred_check_branch
          %1207 = sbr.rel (%p1205) target = $region40
        $region39: #{tpu_custom_call.1} parent=27 // pred_region
          %s1208 = smul.u32 2, %s25
          %s1210 = ssub.s32 1024, 1024
          %1211 = vsyncadd %s1201, %s1210
          %s1212 = smul.addr %s1208, 8
          %s1213 = smul.addr %s24, 16
          %s1214 = sadd.s32 %s1212, %s1213
          %s1215 = smul.addr %s1214, 64
          %s1216 = scalar_lea.hbm %s2, %s1215
          %s1217 = sshll.u32 %s1204, 4
          %s1218 = int_to_ptr.vmem [resolvable:$true] %s1217
          %1223 = dma.vmem_to_hbm [thread:$0]  %s1218, 1024, %s1216, %s1201, 512, 512, 32
        $region40: #{tpu_custom_call.1} parent=27 // pred_fallthru
          _
      $region28: #{tpu_custom_call.1} parent=5 // pred_fallthru
        _
      %p1224 = scmp.le.s32.totalorder 2, %s15
      // Predicated region
      $region41: #{tpu_custom_call.1} parent=5 // pred_check
        %p1225 = pneg %p1224
      $region42: #{tpu_custom_call.1} parent=5 // pred_check_branch
        %1227 = sbr.rel (%p1225) target = $region44
      $region43: #{tpu_custom_call.1} parent=5 // pred_region
        %s1228 = ssub.s32 %s15, 2
        // Predicated region
        $region45: #{tpu_custom_call.1} parent=43 // pred_check
          %p1229 = pneg %p107
        $region46: #{tpu_custom_call.1} parent=43 // pred_check_branch
          %1231 = sbr.rel (%p1229) target = $region48
        $region47: #{tpu_custom_call.1} parent=43 // pred_region
          %s1232 = sand.u32 %s92, 1
          %s1233 = scalar_lea.sflag [#allocation4], %s1232
          %s1234 = sand.u32 %s92, 1
          %s1235 = smul.addr %s1234, 64
          %s1236 = scalar_lea.vmem [#allocation7], %s1235
          %1237 = dma.done %s1233, 1024
        $region48: #{tpu_custom_call.1} parent=43 // pred_fallthru
          _
      $region44: #{tpu_custom_call.1} parent=5 // pred_fallthru
        _
    $region6: #{tpu_custom_call.1} parent=1 // loop_footer
      %s19 = sadd.s32 1, %s15
    $region7: #{tpu_custom_call.1} parent=1 // loop_footer_branch
      %14 = sbr.rel target = $region3
    $region8: #{tpu_custom_call.1} parent=1 // loop_exit
      _
    %1238 = vsyncpa [#allocation3], 1
    %s1239 = scalar_lea.sflag [#allocation3], 1
    %1240 = vsyncpa %s1239, 1
    %1241 = vsyncpa [#allocation6], 1
    %1242 = vsyncpa [#allocation4], 1
    %s1243 = scalar_lea.sflag [#allocation4], 1
    %1244 = vsyncpa %s1243, 1

</llo_original>
